<compile_context>
chip_gen: v6e
topology: v6e:2x2x1
jax: 0.10.0
libtpu: 0.0.40
codegen_flags: <defaults>
</compile_context>

<pallas_src>
import jax
import jax.numpy as jnp
from jax.experimental import pallas as pl
from jax.experimental.pallas import tpu as pltpu


def _softplus(v):
    # numerically stable softplus (f32)
    return jnp.maximum(v, 0.0) + jnp.log1p(jnp.exp(-jnp.abs(v)))


def encoder_kernel(x_ref, e1_ref, e2_ref,
                   weps_ref, w1_ref, w5_ref, w2_ref, wo_ref, bias_ref,
                   out_ref,
                   hist_ref, x5_ref):
    """One row tile of MT = bb*T tokens; every contraction is a bf16 MXU matmul (f32 acc)."""
    f32 = jnp.float32
    mt, c = x_ref.shape
    bb, tp8, _ = hist_ref.shape
    t = tp8 - 8
    two_c = 2 * c
    out_pad = out_ref.shape[1]

    def mm(a, w_ref):
        # bf16 operands, f32 accumulation on the MXU.
        return jnp.dot(a.astype(jnp.bfloat16), w_ref[...],
                       preferred_element_type=f32)

    x = x_ref[...]                                 # (MT, C) f32

    # All biases packed into a single (8, 128)-lane f32 VMEM tile.
    beps = bias_ref[0:1, 0:c]
    b1   = bias_ref[1:2, 0:c]
    b5   = bias_ref[2:3, 0:two_c]
    b2   = bias_ref[3:4, 0:c]
    bo   = bias_ref[4:5, 0:out_pad]

    # ---- AddEps: both eps branches fused into ONE matmul  [eps1; eps2] @ Weps ----
    eps = jnp.concatenate([e1_ref[...], e2_ref[...]], axis=0)      # (2*MT, C), aligned
    teps = jnp.tanh(mm(eps, weps_ref) + beps)                      # (2*MT, C) f32

    h = teps[:mt] + x                                              # AddEps #1
    # ---- dot_cnn1: Conv1d(k=1) + Softplus (channel matmul) ----
    y = _softplus(mm(h, w1_ref) + b1)
    h2 = teps[mt:] + y                                             # AddEps #2

    # ---- cnn_layer: causal Conv1d(k=5, padding=4)[:, :, :-4] + Softplus ----
    # out[t] = sum_{k=0..4} h2[t + k - 4] @ W5[k]   (PyTorch cross-correlation, left pad 4).
    # Assemble the 5 taps into a lane-contiguous (MT, 5C) operand and do ONE K=5C matmul.
    # Each sequence gets its own aligned 8-row zero history header -> no cross-sequence
    # leakage and no masks.
    hist_ref[:, 0:8, :] = jnp.zeros((bb, 8, c), f32)
    hist_ref[:, 8:8 + t, :] = h2.reshape(bb, t, c)
    for k in range(5):                              # static unroll; tap k reads h2[t + k - 4]
        tap = hist_ref[:, 4 + k:4 + k + t, :]       # (bb, T, C)
        x5_ref[:, k * c:(k + 1) * c] = tap.reshape(mt, c)
    z = _softplus(mm(x5_ref[...], w5_ref) + b5)     # (MT, 2C)

    # ---- dot_cnn2: Conv1d(k=1) + Softplus ----
    y2 = _softplus(mm(z, w2_ref) + b2)

    # ---- residual add + dropout (identity in eval) + linear_o ----
    y3 = x + y2
    out_ref[...] = mm(y3, wo_ref) + bo              # lane-dense store (out padded to 128)


def encoder_forward(x, e1, e2, params, *, row_tiles=1):
    """x, e1, e2: (B, T, C) float32.  Returns (B, T, out_shape) float32.

    row_tiles: number of grid steps the flattened B*T row axis is split into.
      1 (default) amortizes per-grid-step overhead into a single step;
      set 2 on v7x so both TensorCores get a tile.  Tiles hold whole sequences.
    """
    B, T, C = x.shape
    weps, beps, w1, b1, w5, b5, w2, b2, wo, bo = params
    out_dim = wo.shape[1]
    out_pad = ((out_dim + 127) // 128) * 128        # lane-dense output slab
    rows = B * T
    assert rows % row_tiles == 0 and (rows // row_tiles) % T == 0, \
        "row tiles must contain whole sequences (causal conv history)"
    mt = rows // row_tiles
    bb = mt // T

    bf16 = jnp.bfloat16
    # Matmul weights pre-cast to bf16 (f32 accumulation happens in-kernel on the MXU).
    weps_b = weps.astype(bf16)
    w1_b = w1.astype(bf16)
    w5_b = w5.reshape(5 * C, 2 * C).astype(bf16)    # tap-major (5C, 2C) for one K=5C matmul
    w2_b = w2.astype(bf16)
    wo_b = jnp.zeros((C, out_pad), jnp.float32).at[:, :out_dim].set(wo).astype(bf16)

    # Pack all five biases into one f32 VMEM tile (one row per bias vector).
    lb = max(128, 2 * C, out_pad)
    bias = jnp.zeros((8, lb), jnp.float32)
    bias = bias.at[0, :C].set(beps.reshape(-1))
    bias = bias.at[1, :C].set(b1.reshape(-1))
    bias = bias.at[2, :2 * C].set(b5.reshape(-1))
    bias = bias.at[3, :C].set(b2.reshape(-1))
    bias = bias.at[4, :out_dim].set(bo.reshape(-1))

    # Flatten (B, T) -> M rows; the kernel re-derives per-sequence structure for the conv.
    x2 = x.reshape(rows, C)
    e1_2 = e1.reshape(rows, C)
    e2_2 = e2.reshape(rows, C)

    row_spec = pl.BlockSpec((mt, C), lambda i: (i, 0))
    full = lambda a: pl.BlockSpec(a.shape, lambda i: (0,) * a.ndim)

    out_padded = pl.pallas_call(
        encoder_kernel,
        out_shape=jax.ShapeDtypeStruct((rows, out_pad), jnp.float32),
        grid=(row_tiles,),
        in_specs=[row_spec, row_spec, row_spec,
                  full(weps_b), full(w1_b), full(w5_b), full(w2_b), full(wo_b),
                  full(bias)],
        out_specs=pl.BlockSpec((mt, out_pad), lambda i: (i, 0)),
        scratch_shapes=[pltpu.VMEM((bb, T + 8, C), jnp.float32),   # per-seq causal history
                        pltpu.VMEM((mt, 5 * C), jnp.float32)],     # assembled conv operand
        compiler_params=pltpu.CompilerParams(
            dimension_semantics=("parallel",)),
    )(x2, e1_2, e2_2, weps_b, w1_b, w5_b, w2_b, wo_b, bias)

    return out_padded[:, :out_dim].reshape(B, T, out_dim)


def ref_forward(x, e1, e2, params, matmul_dtype=jnp.float32):
    """Pure-JAX reference with identical (channels-last) semantics to the PyTorch module."""
    weps, beps, w1, b1, w5, b5, w2, b2, wo, bo = params
    B, T, C = x.shape
    sp = _softplus

    def md(a, w):
        return jnp.matmul(a.astype(matmul_dtype), w.astype(matmul_dtype),
                          preferred_element_type=jnp.float32)

    h = jnp.tanh(md(e1, weps) + beps) + x
    y = sp(md(h, w1) + b1)
    h2 = jnp.tanh(md(e2, weps) + beps) + y
    hp = jnp.concatenate([jnp.zeros((B, 4, C), h2.dtype), h2], axis=1)
    z = jnp.zeros((B, T, 2 * C), jnp.float32)
    for k in range(5):
        z = z + md(hp[:, k:k + T, :], w5[k])
    z = sp(z + b5)
    y2 = sp(md(z, w2) + b2)
    y3 = x + y2
    return md(y3, wo) + bo


def make_params(key, in_shape, out_shape):
    """Deterministic synthetic parameters; matmul-ready (pre-transposed) layouts."""
    C = in_shape
    ks = jax.random.split(key, 10)
    s = 0.1
    # AddEps linear: torch weight (C, C); pass W.T so kernel does in @ W.T
    weps = (jax.random.normal(ks[0], (C, C)) * s).T
    beps = (jax.random.normal(ks[1], (C,)) * s).reshape(1, C)
    # dot_cnn1: Conv1d(C, C, k=1): weight (C, C, 1) -> (C_in, C_out)
    w1 = jnp.transpose(jax.random.normal(ks[2], (C, C, 1)) * s, (1, 0, 2))[:, :, 0]
    b1 = (jax.random.normal(ks[3], (C,)) * s).reshape(1, C)
    # cnn_layer: Conv1d(C, 2C, k=5): weight (2C, C, 5) -> (5, C_in, 2C)
    w5 = jnp.transpose(jax.random.normal(ks[4], (2 * C, C, 5)) * s, (2, 1, 0))
    b5 = (jax.random.normal(ks[5], (2 * C,)) * s).reshape(1, 2 * C)
    # dot_cnn2: Conv1d(2C, C, k=1): weight (C, 2C, 1) -> (2C, C)
    w2 = jnp.transpose(jax.random.normal(ks[6], (C, 2 * C, 1)) * s, (1, 0, 2))[:, :, 0]
    b2 = (jax.random.normal(ks[7], (C,)) * s).reshape(1, C)
    # linear_o: torch weight (out, C) -> (C, out)
    wo = (jax.random.normal(ks[8], (out_shape, C)) * s).T
    bo = (jax.random.normal(ks[9], (out_shape,)) * s).reshape(1, out_shape)
    return tuple(jnp.asarray(p, jnp.float32) for p in
                 (weps, beps, w1, b1, w5, b5, w2, b2, wo, bo))


if __name__ == "__main__":
    B, T, IN_SHAPE, OUT_SHAPE = 2, 16, 8, 6
    hyper_params = {"add_eps": True}   # implemented branch

    root = jax.random.PRNGKey(0)
    k_x, k_e1, k_e2, k_p = jax.random.split(root, 4)

    x = jax.random.normal(k_x, (B, T, IN_SHAPE), dtype=jnp.float32)
    # torch.randn_like(x) inside AddEps, sampled here (two independent calls)
    eps1 = jax.random.normal(k_e1, (B, T, IN_SHAPE), dtype=jnp.float32)
    eps2 = jax.random.normal(k_e2, (B, T, IN_SHAPE), dtype=jnp.float32)

    params = make_params(k_p, IN_SHAPE, OUT_SHAPE)

    # References: bf16-matmul-matched (tight structural check) and pure f32 (drift bound).
    ref_bf16 = ref_forward(x, eps1, eps2, params, matmul_dtype=jnp.bfloat16)
    ref_f32 = ref_forward(x, eps1, eps2, params, matmul_dtype=jnp.float32)

    # Default: single grid step (all B*T rows fused into the matmul M dimension).
    out = jax.block_until_ready(encoder_forward(x, eps1, eps2, params))
    assert out.shape == (B, T, OUT_SHAPE)
    assert jnp.allclose(out, ref_bf16, atol=2e-3, rtol=2e-3), "mismatch vs bf16-matched ref"
    assert jnp.allclose(out, ref_f32, atol=1e-1, rtol=1e-1), "bf16 drift vs f32 ref too large"

    # v7x-style config: 2 parallel row tiles (one whole sequence each) for two TensorCores.
    out2 = jax.block_until_ready(encoder_forward(x, eps1, eps2, params, row_tiles=2))
    assert jnp.allclose(out2, ref_bf16, atol=2e-3, rtol=2e-3), "mismatch (row_tiles=2)"

    print("KERNEL_OK")
</pallas_src>

<mosaic_0001>
module attributes {stable_mosaic.version = 11 : i64} {
  func.func @encoder_kernel(%arg0: i32, %arg1: memref<32x8xf32, #tpu.memory_space<vmem>>, %arg2: memref<32x8xf32, #tpu.memory_space<vmem>>, %arg3: memref<32x8xf32, #tpu.memory_space<vmem>>, %arg4: memref<8x8xbf16, #tpu.memory_space<vmem>>, %arg5: memref<8x8xbf16, #tpu.memory_space<vmem>>, %arg6: memref<40x16xbf16, #tpu.memory_space<vmem>>, %arg7: memref<16x8xbf16, #tpu.memory_space<vmem>>, %arg8: memref<8x128xbf16, #tpu.memory_space<vmem>>, %arg9: memref<8x128xf32, #tpu.memory_space<vmem>>, %arg10: memref<32x128xf32, #tpu.memory_space<vmem>>, %arg11: memref<2x24x8xf32, #tpu.memory_space<vmem>>, %arg12: memref<32x40xf32, #tpu.memory_space<vmem>>) attributes {dimension_semantics = [#tpu.dimension_semantics<parallel>], iteration_bounds = array<i64: 1>, scalar_prefetch = 0 : i64, scratch_operands = 2 : i64, tpu.core_type = #tpu.core_type<tc>, window_params = [{transform_indices = @transform_0, window_bounds = array<i64: 32, 8>}, {transform_indices = @transform_1, window_bounds = array<i64: 32, 8>}, {transform_indices = @transform_2, window_bounds = array<i64: 32, 8>}, {pipeline_mode = #tpu.pipeline_mode<synchronous>, transform_indices = @transform_3, window_bounds = array<i64: 8, 8>}, {pipeline_mode = #tpu.pipeline_mode<synchronous>, transform_indices = @transform_4, window_bounds = array<i64: 8, 8>}, {pipeline_mode = #tpu.pipeline_mode<synchronous>, transform_indices = @transform_5, window_bounds = array<i64: 40, 16>}, {pipeline_mode = #tpu.pipeline_mode<synchronous>, transform_indices = @transform_6, window_bounds = array<i64: 16, 8>}, {pipeline_mode = #tpu.pipeline_mode<synchronous>, transform_indices = @transform_7, window_bounds = array<i64: 8, 128>}, {pipeline_mode = #tpu.pipeline_mode<synchronous>, transform_indices = @transform_8, window_bounds = array<i64: 8, 128>}, {transform_indices = @transform_9, window_bounds = array<i64: 32, 128>}]} {
    %c0 = arith.constant 0 : index
    %c0_0 = arith.constant 0 : index
    %0 = vector.load %arg1[%c0, %c0_0] : memref<32x8xf32, #tpu.memory_space<vmem>>, vector<32x8xf32>
    %c0_1 = arith.constant 0 : index
    %c0_2 = arith.constant 0 : index
    %1 = vector.load %arg9[%c0_1, %c0_2] : memref<8x128xf32, #tpu.memory_space<vmem>>, vector<1x8xf32>
    %c1 = arith.constant 1 : index
    %c0_3 = arith.constant 0 : index
    %2 = vector.load %arg9[%c1, %c0_3] : memref<8x128xf32, #tpu.memory_space<vmem>>, vector<1x8xf32>
    %c2 = arith.constant 2 : index
    %c0_4 = arith.constant 0 : index
    %3 = vector.load %arg9[%c2, %c0_4] : memref<8x128xf32, #tpu.memory_space<vmem>>, vector<1x16xf32>
    %c3 = arith.constant 3 : index
    %c0_5 = arith.constant 0 : index
    %4 = vector.load %arg9[%c3, %c0_5] : memref<8x128xf32, #tpu.memory_space<vmem>>, vector<1x8xf32>
    %c4 = arith.constant 4 : index
    %c0_6 = arith.constant 0 : index
    %5 = vector.load %arg9[%c4, %c0_6] : memref<8x128xf32, #tpu.memory_space<vmem>>, vector<1x128xf32>
    %c0_7 = arith.constant 0 : index
    %c0_8 = arith.constant 0 : index
    %6 = vector.load %arg2[%c0_7, %c0_8] : memref<32x8xf32, #tpu.memory_space<vmem>>, vector<32x8xf32>
    %c0_9 = arith.constant 0 : index
    %c0_10 = arith.constant 0 : index
    %7 = vector.load %arg3[%c0_9, %c0_10] : memref<32x8xf32, #tpu.memory_space<vmem>>, vector<32x8xf32>
    %8 = tpu.concatenate %6, %7 in 0 : vector<32x8xf32>, vector<32x8xf32> -> vector<64x8xf32>
    %9 = arith.truncf %8 : vector<64x8xf32> to vector<64x8xbf16>
    %c0_11 = arith.constant 0 : index
    %c0_12 = arith.constant 0 : index
    %10 = vector.load %arg4[%c0_11, %c0_12] : memref<8x8xbf16, #tpu.memory_space<vmem>>, vector<8x8xbf16>
    %cst = arith.constant dense<0.000000e+00> : vector<64x8xf32>
    %11 = tpu.matmul %9, %10, %cst {dimension_numbers = #tpu.dot_dimension_numbers<[1], [0], [0], [1], [0, 0, 1, 1], [], []>} : vector<64x8xbf16>, vector<8x8xbf16>, vector<64x8xf32> -> vector<64x8xf32>
    %12 = vector.broadcast %1 : vector<1x8xf32> to vector<64x8xf32>
    %13 = arith.addf %11, %12 : vector<64x8xf32>
    %14 = math.tanh %13 : vector<64x8xf32>
    %15 = vector.extract_strided_slice %14 {offsets = [0, 0], sizes = [32, 8], strides = [1, 1]} : vector<64x8xf32> to vector<32x8xf32>
    %16 = arith.addf %15, %0 : vector<32x8xf32>
    %17 = arith.truncf %16 : vector<32x8xf32> to vector<32x8xbf16>
    %c0_13 = arith.constant 0 : index
    %c0_14 = arith.constant 0 : index
    %18 = vector.load %arg5[%c0_13, %c0_14] : memref<8x8xbf16, #tpu.memory_space<vmem>>, vector<8x8xbf16>
    %cst_15 = arith.constant dense<0.000000e+00> : vector<32x8xf32>
    %19 = tpu.matmul %17, %18, %cst_15 {dimension_numbers = #tpu.dot_dimension_numbers<[1], [0], [0], [1], [0, 0, 1, 1], [], []>} : vector<32x8xbf16>, vector<8x8xbf16>, vector<32x8xf32> -> vector<32x8xf32>
    %20 = vector.broadcast %2 : vector<1x8xf32> to vector<32x8xf32>
    %21 = arith.addf %19, %20 : vector<32x8xf32>
    %cst_16 = arith.constant 0.000000e+00 : f32
    %22 = vector.broadcast %cst_16 : f32 to vector<32x8xf32>
    %23 = arith.maximumf %21, %22 : vector<32x8xf32>
    %24 = math.absf %21 : vector<32x8xf32>
    %cst_17 = arith.constant 0.000000e+00 : f32
    %25 = vector.broadcast %cst_17 : f32 to vector<32x8xf32>
    %26 = arith.subf %25, %24 : vector<32x8xf32>
    %27 = math.exp %26 : vector<32x8xf32>
    %28 = math.log1p %27 : vector<32x8xf32>
    %29 = arith.addf %23, %28 : vector<32x8xf32>
    %30 = vector.extract_strided_slice %14 {offsets = [32, 0], sizes = [32, 8], strides = [1, 1]} : vector<64x8xf32> to vector<32x8xf32>
    %31 = arith.addf %30, %29 : vector<32x8xf32>
    %cst_18 = arith.constant 0.000000e+00 : f32
    %32 = vector.broadcast %cst_18 : f32 to vector<2x8x8xf32>
    %c0_19 = arith.constant 0 : index
    %c0_20 = arith.constant 0 : index
    %c0_21 = arith.constant 0 : index
    %33 = vector.load %arg11[%c0_19, %c0_20, %c0_21] : memref<2x24x8xf32, #tpu.memory_space<vmem>>, vector<2x8x8xf32>
    tpu.vector_store %arg11[%c0_19, %c0_20, %c0_21], %32 {strides = array<i32>} : memref<2x24x8xf32, #tpu.memory_space<vmem>>, vector<2x8x8xf32>,
    %34 = vector.shape_cast %31 : vector<32x8xf32> to vector<2x16x8xf32>
    %c0_22 = arith.constant 0 : index
    %c8 = arith.constant 8 : index
    %c0_23 = arith.constant 0 : index
    %35 = vector.load %arg11[%c0_22, %c8, %c0_23] : memref<2x24x8xf32, #tpu.memory_space<vmem>>, vector<2x16x8xf32>
    tpu.vector_store %arg11[%c0_22, %c8, %c0_23], %34 {strides = array<i32>} : memref<2x24x8xf32, #tpu.memory_space<vmem>>, vector<2x16x8xf32>,
    %c0_24 = arith.constant 0 : index
    %c4_25 = arith.constant 4 : index
    %c0_26 = arith.constant 0 : index
    %36 = vector.load %arg11[%c0_24, %c4_25, %c0_26] : memref<2x24x8xf32, #tpu.memory_space<vmem>>, vector<2x16x8xf32>
    %37 = vector.shape_cast %36 : vector<2x16x8xf32> to vector<32x8xf32>
    %c0_27 = arith.constant 0 : index
    %c0_28 = arith.constant 0 : index
    %38 = vector.load %arg12[%c0_27, %c0_28] : memref<32x40xf32, #tpu.memory_space<vmem>>, vector<32x8xf32>
    tpu.vector_store %arg12[%c0_27, %c0_28], %37 {strides = array<i32>} : memref<32x40xf32, #tpu.memory_space<vmem>>, vector<32x8xf32>,
    %c0_29 = arith.constant 0 : index
    %c5 = arith.constant 5 : index
    %c0_30 = arith.constant 0 : index
    %39 = vector.load %arg11[%c0_29, %c5, %c0_30] : memref<2x24x8xf32, #tpu.memory_space<vmem>>, vector<2x16x8xf32>
    %40 = vector.shape_cast %39 : vector<2x16x8xf32> to vector<32x8xf32>
    %c0_31 = arith.constant 0 : index
    %c8_32 = arith.constant 8 : index
    %41 = vector.load %arg12[%c0_31, %c8_32] : memref<32x40xf32, #tpu.memory_space<vmem>>, vector<32x8xf32>
    tpu.vector_store %arg12[%c0_31, %c8_32], %40 {strides = array<i32>} : memref<32x40xf32, #tpu.memory_space<vmem>>, vector<32x8xf32>,
    %c0_33 = arith.constant 0 : index
    %c6 = arith.constant 6 : index
    %c0_34 = arith.constant 0 : index
    %42 = vector.load %arg11[%c0_33, %c6, %c0_34] : memref<2x24x8xf32, #tpu.memory_space<vmem>>, vector<2x16x8xf32>
    %43 = vector.shape_cast %42 : vector<2x16x8xf32> to vector<32x8xf32>
    %c0_35 = arith.constant 0 : index
    %c16 = arith.constant 16 : index
    %44 = vector.load %arg12[%c0_35, %c16] : memref<32x40xf32, #tpu.memory_space<vmem>>, vector<32x8xf32>
    tpu.vector_store %arg12[%c0_35, %c16], %43 {strides = array<i32>} : memref<32x40xf32, #tpu.memory_space<vmem>>, vector<32x8xf32>,
    %c0_36 = arith.constant 0 : index
    %c7 = arith.constant 7 : index
    %c0_37 = arith.constant 0 : index
    %45 = vector.load %arg11[%c0_36, %c7, %c0_37] : memref<2x24x8xf32, #tpu.memory_space<vmem>>, vector<2x16x8xf32>
    %46 = vector.shape_cast %45 : vector<2x16x8xf32> to vector<32x8xf32>
    %c0_38 = arith.constant 0 : index
    %c24 = arith.constant 24 : index
    %47 = vector.load %arg12[%c0_38, %c24] : memref<32x40xf32, #tpu.memory_space<vmem>>, vector<32x8xf32>
    tpu.vector_store %arg12[%c0_38, %c24], %46 {strides = array<i32>} : memref<32x40xf32, #tpu.memory_space<vmem>>, vector<32x8xf32>,
    %c0_39 = arith.constant 0 : index
    %c8_40 = arith.constant 8 : index
    %c0_41 = arith.constant 0 : index
    %48 = vector.load %arg11[%c0_39, %c8_40, %c0_41] : memref<2x24x8xf32, #tpu.memory_space<vmem>>, vector<2x16x8xf32>
    %49 = vector.shape_cast %48 : vector<2x16x8xf32> to vector<32x8xf32>
    %c0_42 = arith.constant 0 : index
    %c32 = arith.constant 32 : index
    %50 = vector.load %arg12[%c0_42, %c32] : memref<32x40xf32, #tpu.memory_space<vmem>>, vector<32x8xf32>
    tpu.vector_store %arg12[%c0_42, %c32], %49 {strides = array<i32>} : memref<32x40xf32, #tpu.memory_space<vmem>>, vector<32x8xf32>,
    %c0_43 = arith.constant 0 : index
    %c0_44 = arith.constant 0 : index
    %51 = vector.load %arg12[%c0_43, %c0_44] : memref<32x40xf32, #tpu.memory_space<vmem>>, vector<32x40xf32>
    %52 = arith.truncf %51 : vector<32x40xf32> to vector<32x40xbf16>
    %c0_45 = arith.constant 0 : index
    %c0_46 = arith.constant 0 : index
    %53 = vector.load %arg6[%c0_45, %c0_46] : memref<40x16xbf16, #tpu.memory_space<vmem>>, vector<40x16xbf16>
    %cst_47 = arith.constant dense<0.000000e+00> : vector<32x16xf32>
    %54 = tpu.matmul %52, %53, %cst_47 {dimension_numbers = #tpu.dot_dimension_numbers<[1], [0], [0], [1], [0, 0, 1, 1], [], []>} : vector<32x40xbf16>, vector<40x16xbf16>, vector<32x16xf32> -> vector<32x16xf32>
    %55 = vector.broadcast %3 : vector<1x16xf32> to vector<32x16xf32>
    %56 = arith.addf %54, %55 : vector<32x16xf32>
    %cst_48 = arith.constant 0.000000e+00 : f32
    %57 = vector.broadcast %cst_48 : f32 to vector<32x16xf32>
    %58 = arith.maximumf %56, %57 : vector<32x16xf32>
    %59 = math.absf %56 : vector<32x16xf32>
    %cst_49 = arith.constant 0.000000e+00 : f32
    %60 = vector.broadcast %cst_49 : f32 to vector<32x16xf32>
    %61 = arith.subf %60, %59 : vector<32x16xf32>
    %62 = math.exp %61 : vector<32x16xf32>
    %63 = math.log1p %62 : vector<32x16xf32>
    %64 = arith.addf %58, %63 : vector<32x16xf32>
    %65 = arith.truncf %64 : vector<32x16xf32> to vector<32x16xbf16>
    %c0_50 = arith.constant 0 : index
    %c0_51 = arith.constant 0 : index
    %66 = vector.load %arg7[%c0_50, %c0_51] : memref<16x8xbf16, #tpu.memory_space<vmem>>, vector<16x8xbf16>
    %cst_52 = arith.constant dense<0.000000e+00> : vector<32x8xf32>
    %67 = tpu.matmul %65, %66, %cst_52 {dimension_numbers = #tpu.dot_dimension_numbers<[1], [0], [0], [1], [0, 0, 1, 1], [], []>} : vector<32x16xbf16>, vector<16x8xbf16>, vector<32x8xf32> -> vector<32x8xf32>
    %68 = vector.broadcast %4 : vector<1x8xf32> to vector<32x8xf32>
    %69 = arith.addf %67, %68 : vector<32x8xf32>
    %cst_53 = arith.constant 0.000000e+00 : f32
    %70 = vector.broadcast %cst_53 : f32 to vector<32x8xf32>
    %71 = arith.maximumf %69, %70 : vector<32x8xf32>
    %72 = math.absf %69 : vector<32x8xf32>
    %cst_54 = arith.constant 0.000000e+00 : f32
    %73 = vector.broadcast %cst_54 : f32 to vector<32x8xf32>
    %74 = arith.subf %73, %72 : vector<32x8xf32>
    %75 = math.exp %74 : vector<32x8xf32>
    %76 = math.log1p %75 : vector<32x8xf32>
    %77 = arith.addf %71, %76 : vector<32x8xf32>
    %78 = arith.addf %0, %77 : vector<32x8xf32>
    %79 = arith.truncf %78 : vector<32x8xf32> to vector<32x8xbf16>
    %c0_55 = arith.constant 0 : index
    %c0_56 = arith.constant 0 : index
    %80 = vector.load %arg8[%c0_55, %c0_56] : memref<8x128xbf16, #tpu.memory_space<vmem>>, vector<8x128xbf16>
    %cst_57 = arith.constant dense<0.000000e+00> : vector<32x128xf32>
    %81 = tpu.matmul %79, %80, %cst_57 {dimension_numbers = #tpu.dot_dimension_numbers<[1], [0], [0], [1], [0, 0, 1, 1], [], []>} : vector<32x8xbf16>, vector<8x128xbf16>, vector<32x128xf32> -> vector<32x128xf32>
    %82 = vector.broadcast %5 : vector<1x128xf32> to vector<32x128xf32>
    %83 = arith.addf %81, %82 : vector<32x128xf32>
    %c0_58 = arith.constant 0 : index
    %c0_59 = arith.constant 0 : index
    %84 = vector.load %arg10[%c0_58, %c0_59] : memref<32x128xf32, #tpu.memory_space<vmem>>, vector<32x128xf32>
    tpu.vector_store %arg10[%c0_58, %c0_59], %83 {strides = array<i32>} : memref<32x128xf32, #tpu.memory_space<vmem>>, vector<32x128xf32>,
    return
  }
  func.func @transform_0(%arg0: i32) -> (i32, i32) {
    %c0_i32 = arith.constant 0 : i32
    %c0_i32_0 = arith.constant 0 : i32
    return %arg0, %c0_i32 : i32, i32
  }
  func.func @transform_1(%arg0: i32) -> (i32, i32) {
    %c0_i32 = arith.constant 0 : i32
    %c0_i32_0 = arith.constant 0 : i32
    return %arg0, %c0_i32 : i32, i32
  }
  func.func @transform_2(%arg0: i32) -> (i32, i32) {
    %c0_i32 = arith.constant 0 : i32
    %c0_i32_0 = arith.constant 0 : i32
    return %arg0, %c0_i32 : i32, i32
  }
  func.func @transform_3(%arg0: i32) -> (i32, i32) {
    %c0_i32 = arith.constant 0 : i32
    %c0_i32_0 = arith.constant 0 : i32
    %c0_i32_1 = arith.constant 0 : i32
    return %c0_i32, %c0_i32_0 : i32, i32
  }
  func.func @transform_4(%arg0: i32) -> (i32, i32) {
    %c0_i32 = arith.constant 0 : i32
    %c0_i32_0 = arith.constant 0 : i32
    %c0_i32_1 = arith.constant 0 : i32
    return %c0_i32, %c0_i32_0 : i32, i32
  }
  func.func @transform_5(%arg0: i32) -> (i32, i32) {
    %c0_i32 = arith.constant 0 : i32
    %c0_i32_0 = arith.constant 0 : i32
    %c0_i32_1 = arith.constant 0 : i32
    return %c0_i32, %c0_i32_0 : i32, i32
  }
  func.func @transform_6(%arg0: i32) -> (i32, i32) {
    %c0_i32 = arith.constant 0 : i32
    %c0_i32_0 = arith.constant 0 : i32
    %c0_i32_1 = arith.constant 0 : i32
    return %c0_i32, %c0_i32_0 : i32, i32
  }
  func.func @transform_7(%arg0: i32) -> (i32, i32) {
    %c0_i32 = arith.constant 0 : i32
    %c0_i32_0 = arith.constant 0 : i32
    %c0_i32_1 = arith.constant 0 : i32
    return %c0_i32, %c0_i32_0 : i32, i32
  }
  func.func @transform_8(%arg0: i32) -> (i32, i32) {
    %c0_i32 = arith.constant 0 : i32
    %c0_i32_0 = arith.constant 0 : i32
    %c0_i32_1 = arith.constant 0 : i32
    return %c0_i32, %c0_i32_0 : i32, i32
  }
  func.func @transform_9(%arg0: i32) -> (i32, i32) {
    %c0_i32 = arith.constant 0 : i32
    %c0_i32_0 = arith.constant 0 : i32
    return %arg0, %c0_i32 : i32, i32
  }
}

</mosaic_0001>

<llo_original>
// kernel: tpu_custom_call.1
$region0: #{tpu_custom_call.1}
  #allocation0 [shape = 'u32[]', space=smem, size = 0x4, offset = 0x4, fixed_abs, tag = 'smem constant byte address 0x4 - core index']
  #allocation1 [shape = 'u32[144,128]{1,0:T(1,128)}', space=vmem, size = 0x12000, scoped, tag = 'internal scratch']
  #allocation2 [shape = 'f32[2,24,8]{2,1,0:T(8,128)}', space=vmem, size = 0x6000, scoped, tag = 'scratch operand']
  #allocation3 [shape = 'f32[32,40]{1,0:T(8,128)}', space=vmem, size = 0x4000, scoped, tag = 'scratch operand']
  %s0 = inlined_call_operand.vmem [shape: f32[32,8], index: 0, kind: input, shape index: {}]
  %s1 = inlined_call_operand.vmem [shape: f32[32,8], index: 1, kind: input, shape index: {}]
  %s2 = inlined_call_operand.vmem [shape: f32[32,8], index: 2, kind: input, shape index: {}]
  %s3 = inlined_call_operand.vmem [shape: bf16[8,8], index: 3, kind: input, shape index: {}]
  %s4 = inlined_call_operand.vmem [shape: bf16[8,8], index: 4, kind: input, shape index: {}]
  %s5 = inlined_call_operand.vmem [shape: bf16[40,16], index: 5, kind: input, shape index: {}]
  %s6 = inlined_call_operand.vmem [shape: bf16[16,8], index: 6, kind: input, shape index: {}]
  %s7 = inlined_call_operand.vmem [shape: bf16[8,128], index: 7, kind: input, shape index: {}]
  %s8 = inlined_call_operand.vmem [shape: f32[8,128], index: 8, kind: input, shape index: {}]
  %s9 = inlined_call_operand.hbm [shape: f32[32,128], index: 9, kind: output, shape index: {}]
  %s10 = sld [smem:[#allocation0]]
  $region46: #{tpu_custom_call.1} parent=0
    _
  %s12 = ssub.s32 1, %s10
  %s13 = scalar_select 0, %s12, %s10
  $region1: #{tpu_custom_call.1} parent=0
    #allocation4 [shape = 'u8[16384]{0}', space=vmem, size = 0x4000, scoped, tag = 'output window, operand 0, single buffered']
    #allocation5 [shape = 's32[1]{0}', space=sflag, size = 0x4, scoped, tag = 'scoped memory for tpu_custom_call.1']
    %14 = vsyncpa [#allocation5], 0
    // Predicated region
    $region2: #{tpu_custom_call.1} parent=1 // pred_check
      _
    $region3: #{tpu_custom_call.1} parent=1 // pred_check_branch
      %16 = sbr.rel (0) target = $region5
    $region4: #{tpu_custom_call.1} parent=1 // pred_region
      _
    $region5: #{tpu_custom_call.1} parent=1 // pred_fallthru
      _
    // Predicated region
    $region6: #{tpu_custom_call.1} parent=1 // pred_check
      _
    $region7: #{tpu_custom_call.1} parent=1 // pred_check_branch
      %18 = sbr.rel (0) target = $region9
    $region8: #{tpu_custom_call.1} parent=1 // pred_region
      _
    $region9: #{tpu_custom_call.1} parent=1 // pred_fallthru
      _
    // Predicated region
    $region10: #{tpu_custom_call.1} parent=1 // pred_check
      _
    $region11: #{tpu_custom_call.1} parent=1 // pred_check_branch
      %20 = sbr.rel (0) target = $region13
    $region12: #{tpu_custom_call.1} parent=1 // pred_region
      _
    $region13: #{tpu_custom_call.1} parent=1 // pred_fallthru
      _
    // Predicated region
    $region14: #{tpu_custom_call.1} parent=1 // pred_check
      _
    $region15: #{tpu_custom_call.1} parent=1 // pred_check_branch
      %22 = sbr.rel (0) target = $region17
    $region16: #{tpu_custom_call.1} parent=1 // pred_region
      _
    $region17: #{tpu_custom_call.1} parent=1 // pred_fallthru
      _
    // Predicated region
    $region18: #{tpu_custom_call.1} parent=1 // pred_check
      _
    $region19: #{tpu_custom_call.1} parent=1 // pred_check_branch
      %24 = sbr.rel (0) target = $region21
    $region20: #{tpu_custom_call.1} parent=1 // pred_region
      _
    $region21: #{tpu_custom_call.1} parent=1 // pred_fallthru
      _
    // Predicated region
    $region22: #{tpu_custom_call.1} parent=1 // pred_check
      _
    $region23: #{tpu_custom_call.1} parent=1 // pred_check_branch
      %26 = sbr.rel (0) target = $region25
    $region24: #{tpu_custom_call.1} parent=1 // pred_region
      _
    $region25: #{tpu_custom_call.1} parent=1 // pred_fallthru
      _
    // Predicated region
    $region26: #{tpu_custom_call.1} parent=1 // pred_check
      _
    $region27: #{tpu_custom_call.1} parent=1 // pred_check_branch
      %28 = sbr.rel (0) target = $region29
    $region28: #{tpu_custom_call.1} parent=1 // pred_region
      _
    $region29: #{tpu_custom_call.1} parent=1 // pred_fallthru
      _
    // Predicated region
    $region30: #{tpu_custom_call.1} parent=1 // pred_check
      _
    $region31: #{tpu_custom_call.1} parent=1 // pred_check_branch
      %30 = sbr.rel (0) target = $region33
    $region32: #{tpu_custom_call.1} parent=1 // pred_region
      _
    $region33: #{tpu_custom_call.1} parent=1 // pred_fallthru
      _
    // Predicated region
    $region34: #{tpu_custom_call.1} parent=1 // pred_check
      _
    $region35: #{tpu_custom_call.1} parent=1 // pred_check_branch
      %32 = sbr.rel (0) target = $region37
    $region36: #{tpu_custom_call.1} parent=1 // pred_region
      _
    $region37: #{tpu_custom_call.1} parent=1 // pred_fallthru
      _
    %v34 = vld [vmem:[%s0] sm:$0xff]
    %v35 = vld [vmem:[%s0 + $0x8] sm:$0xff]
    %v36 = vld [vmem:[%s0 + $0x10] sm:$0xff]
    %v37 = vld [vmem:[%s0 + $0x18] sm:$0xff]
    %v38 = vld [vmem:[%s8] sm:$0x1]
    %v39 = vld [vmem:[%s8 + $0x1] sm:$0x1]
    %v40 = vld [vmem:[%s8 + $0x2] sm:$0x1]
    %v41 = vld [vmem:[%s8 + $0x3] sm:$0x1]
    %v42 = vld [vmem:[%s8 + $0x4] sm:$0x1]
    %v43 = vld [vmem:[%s1] sm:$0xff]
    %v44 = vld [vmem:[%s1 + $0x8] sm:$0xff]
    %v45 = vld [vmem:[%s1 + $0x10] sm:$0xff]
    %v46 = vld [vmem:[%s1 + $0x18] sm:$0xff]
    %v47 = vld [vmem:[%s2] sm:$0xff]
    %v48 = vld [vmem:[%s2 + $0x8] sm:$0xff]
    %v49 = vld [vmem:[%s2 + $0x10] sm:$0xff]
    %v50 = vld [vmem:[%s2 + $0x18] sm:$0xff]
    %v51 = vpack.c.bf16 %v44, %v43
    %v52 = vpack.c.bf16 %v46, %v45
    %v53 = vpack.c.bf16 %v48, %v47
    %v54 = vpack.c.bf16 %v50, %v49
    %v55 = vld [vmem:[%s3] sm:$0xf]
    %v56 = vlaneseq
    %v57 = vshrl.u32 %v56, 7
    %v58 = vsub.s32 0, %v57
    %v59 = vrot.slane %v38, %v58
    %vm60 = vcmask 64512
    %v62 = vsel %vm60, %v51, 0
    %v65 = vsel %vm60, %v52, 0
    %v68 = vsel %vm60, %v53, 0
    %v71 = vsel %vm60, %v54, 0
    %vm73 = vcmask 1043456
    %v75 = vsel %vm73, %v55, 0
    %77 = vmatprep.subr.bf16.mxu0 0
    %78 = vmatpush1.bf16.msra.mxu0 0
    %79 = vmatprep.subr.bf16.mxu0 0
    %80 = vmatpush1.bf16.msra.mxu0 0
    %81 = vmatprep.subr.bf16.mxu0 0
    %82 = vmatpush1.bf16.msra.mxu0 0
    %83 = vmatprep.subr.bf16.mxu0 0
    %84 = vmatpush1.bf16.msra.mxu0 0
    %85 = vmatprep.subr.bf16.mxu0 0
    %86 = vmatpush1.bf16.msra.mxu0 0
    %87 = vmatprep.subr.bf16.mxu0 0
    %88 = vmatpush1.bf16.msra.mxu0 0
    %89 = vmatprep.subr.bf16.mxu0 0
    %90 = vmatpush1.bf16.msra.mxu0 0
    %91 = vmatprep.subr.bf16.mxu0 0
    %92 = vmatpush1.bf16.msra.mxu0 %v75
    %93 = vmatprep.subr.bf16.mxu0 0
    %94 = vmatpush2.bf16.msra.mxu0 0
    %95 = vmatprep.subr.bf16.mxu0 0
    %96 = vmatpush2.bf16.msra.mxu0 0
    %97 = vmatprep.subr.bf16.mxu0 0
    %98 = vmatpush2.bf16.msra.mxu0 0
    %99 = vmatprep.subr.bf16.mxu0 0
    %100 = vmatpush2.bf16.msra.mxu0 0
    %101 = vmatprep.subr.bf16.mxu0 0
    %102 = vmatpush2.bf16.msra.mxu0 0
    %103 = vmatprep.subr.bf16.mxu0 0
    %104 = vmatpush2.bf16.msra.mxu0 0
    %105 = vmatprep.subr.bf16.mxu0 0
    %106 = vmatpush2.bf16.msra.mxu0 0
    %107 = vmatprep.subr.bf16.mxu0 0
    %108 = vmatpush2.bf16.msra.mxu0 0
    %109 = vmatprep.mubr.bf16.mxu0 0
    %110 = vmatmul.mubr.bf16.gmra.mxu0 %v62
    %v111 = vpop.f32.mrf.mxu0
    %v112 = vadd.f32 %v59, %v111
    %v113 = vpop.f32.mrf.mxu0
    %v114 = vpop.f32.mrf.mxu0
    %v115 = vadd.f32 %v59, %v114
    %v116 = vpop.f32.mrf.mxu0
    %117 = vmatprep.mubr.bf16.mxu0 0
    %118 = vmatmul.mubr.bf16.gmra.mxu0 %v65
    %v119 = vpop.f32.mrf.mxu0
    %v120 = vadd.f32 %v59, %v119
    %v121 = vpop.f32.mrf.mxu0
    %v122 = vpop.f32.mrf.mxu0
    %v123 = vadd.f32 %v59, %v122
    %v124 = vpop.f32.mrf.mxu0
    %125 = vmatprep.mubr.bf16.mxu0 0
    %126 = vmatmul.mubr.bf16.gmra.mxu0 %v68
    %v127 = vpop.f32.mrf.mxu0
    %v128 = vadd.f32 %v59, %v127
    %v129 = vpop.f32.mrf.mxu0
    %v130 = vpop.f32.mrf.mxu0
    %v131 = vadd.f32 %v59, %v130
    %v132 = vpop.f32.mrf.mxu0
    %133 = vmatprep.mubr.bf16.mxu0 0
    %134 = vmatmul.mubr.bf16.gmra.mxu0 %v71
    %v135 = vpop.f32.mrf.mxu0
    %v136 = vadd.f32 %v59, %v135
    %v137 = vpop.f32.mrf.mxu0
    %v138 = vpop.f32.mrf.mxu0
    %v139 = vadd.f32 %v59, %v138
    %v140 = vpop.f32.mrf.mxu0
    %141 = vdwg.mxu0
    %v142 = vtanh.pop %v112
    %v143 = vtanh.pop %v115
    %v144 = vtanh.pop %v120
    %v145 = vtanh.pop %v123
    %v146 = vtanh.pop %v128
    %v147 = vtanh.pop %v131
    %v148 = vtanh.pop %v136
    %v149 = vtanh.pop %v139
    %v150 = vadd.f32 %v142, %v34
    %v151 = vadd.f32 %v143, %v35
    %v152 = vadd.f32 %v144, %v36
    %v153 = vadd.f32 %v145, %v37
    %v154 = vpack.c.bf16 %v151, %v150
    %v155 = vpack.c.bf16 %v153, %v152
    %v156 = vld [vmem:[%s4] sm:$0xf]
    %v157 = vlaneseq
    %v158 = vshrl.u32 %v157, 7
    %v159 = vsub.s32 0, %v158
    %v160 = vrot.slane %v39, %v159
    %v162 = vsel %vm60, %v154, 0
    %v165 = vsel %vm60, %v155, 0
    %v168 = vsel %vm73, %v156, 0
    %170 = vmatprep.subr.bf16.mxu0 0
    %171 = vmatpush1.bf16.msra.mxu0 0
    %172 = vmatprep.subr.bf16.mxu0 0
    %173 = vmatpush1.bf16.msra.mxu0 0
    %174 = vmatprep.subr.bf16.mxu0 0
    %175 = vmatpush1.bf16.msra.mxu0 0
    %176 = vmatprep.subr.bf16.mxu0 0
    %177 = vmatpush1.bf16.msra.mxu0 0
    %178 = vmatprep.subr.bf16.mxu0 0
    %179 = vmatpush1.bf16.msra.mxu0 0
    %180 = vmatprep.subr.bf16.mxu0 0
    %181 = vmatpush1.bf16.msra.mxu0 0
    %182 = vmatprep.subr.bf16.mxu0 0
    %183 = vmatpush1.bf16.msra.mxu0 0
    %184 = vmatprep.subr.bf16.mxu0 0
    %185 = vmatpush1.bf16.msra.mxu0 %v168
    %186 = vmatprep.subr.bf16.mxu0 0
    %187 = vmatpush2.bf16.msra.mxu0 0
    %188 = vmatprep.subr.bf16.mxu0 0
    %189 = vmatpush2.bf16.msra.mxu0 0
    %190 = vmatprep.subr.bf16.mxu0 0
    %191 = vmatpush2.bf16.msra.mxu0 0
    %192 = vmatprep.subr.bf16.mxu0 0
    %193 = vmatpush2.bf16.msra.mxu0 0
    %194 = vmatprep.subr.bf16.mxu0 0
    %195 = vmatpush2.bf16.msra.mxu0 0
    %196 = vmatprep.subr.bf16.mxu0 0
    %197 = vmatpush2.bf16.msra.mxu0 0
    %198 = vmatprep.subr.bf16.mxu0 0
    %199 = vmatpush2.bf16.msra.mxu0 0
    %200 = vmatprep.subr.bf16.mxu0 0
    %201 = vmatpush2.bf16.msra.mxu0 0
    %202 = vmatprep.mubr.bf16.mxu0 0
    %203 = vmatmul.mubr.bf16.gmra.mxu0 %v162
    %v204 = vpop.f32.mrf.mxu0
    %v205 = vadd.f32 %v160, %v204
    %v206 = vpop.f32.mrf.mxu0
    %v207 = vpop.f32.mrf.mxu0
    %v208 = vadd.f32 %v160, %v207
    %v209 = vpop.f32.mrf.mxu0
    %210 = vmatprep.mubr.bf16.mxu0 0
    %211 = vmatmul.mubr.bf16.gmra.mxu0 %v165
    %v212 = vpop.f32.mrf.mxu0
    %v213 = vadd.f32 %v160, %v212
    %v214 = vpop.f32.mrf.mxu0
    %v215 = vpop.f32.mrf.mxu0
    %v216 = vadd.f32 %v160, %v215
    %v217 = vpop.f32.mrf.mxu0
    %218 = vdwg.mxu0
    %v219 = vmax.f32 %v205, 0.0
    %v220 = vmax.f32 %v208, 0.0
    %v221 = vmax.f32 %v213, 0.0
    %v222 = vmax.f32 %v216, 0.0
    %v223 = vand.u32 2147483647, %v205
    %v224 = vand.u32 2147483647, %v208
    %v225 = vand.u32 2147483647, %v213
    %v226 = vand.u32 2147483647, %v216
    %v227 = vsub.f32 0.0, %v223
    %v228 = vsub.f32 0.0, %v224
    %v229 = vsub.f32 0.0, %v225
    %v230 = vsub.f32 0.0, %v226
    %v231 = vmul.f32 %v227, 1.442695
    %v232 = vpow.pop %v231
    %v233 = vmul.f32 %v228, 1.442695
    %v234 = vpow.pop %v233
    %v235 = vmul.f32 %v229, 1.442695
    %v236 = vpow.pop %v235
    %v237 = vmul.f32 %v230, 1.442695
    %v238 = vpow.pop %v237
    %v239 = vadd.f32 %v232, 1.0
    %v240 = vlog2.pop %v239
    %v241 = vmul.f32 %v240, 0.6931472
    %v242 = vmul.f32 -0.5, %v232
    %v243 = vadd.f32 %v242, 1.0
    %v244 = vmul.f32 %v243, %v232
    %v245 = vand.u32 2147483647, %v232
    %vm246 = vcmp.lt.f32.partialorder %v245, 0.0004427343
    %v247 = vsel %vm246, %v244, %v241
    %v248 = vadd.f32 %v234, 1.0
    %v249 = vlog2.pop %v248
    %v250 = vmul.f32 %v249, 0.6931472
    %v251 = vmul.f32 -0.5, %v234
    %v252 = vadd.f32 %v251, 1.0
    %v253 = vmul.f32 %v252, %v234
    %v254 = vand.u32 2147483647, %v234
    %vm255 = vcmp.lt.f32.partialorder %v254, 0.0004427343
    %v256 = vsel %vm255, %v253, %v250
    %v257 = vadd.f32 %v236, 1.0
    %v258 = vlog2.pop %v257
    %v259 = vmul.f32 %v258, 0.6931472
    %v260 = vmul.f32 -0.5, %v236
    %v261 = vadd.f32 %v260, 1.0
    %v262 = vmul.f32 %v261, %v236
    %v263 = vand.u32 2147483647, %v236
    %vm264 = vcmp.lt.f32.partialorder %v263, 0.0004427343
    %v265 = vsel %vm264, %v262, %v259
    %v266 = vadd.f32 %v238, 1.0
    %v267 = vlog2.pop %v266
    %v268 = vmul.f32 %v267, 0.6931472
    %v269 = vmul.f32 -0.5, %v238
    %v270 = vadd.f32 %v269, 1.0
    %v271 = vmul.f32 %v270, %v238
    %v272 = vand.u32 2147483647, %v238
    %vm273 = vcmp.lt.f32.partialorder %v272, 0.0004427343
    %v274 = vsel %vm273, %v271, %v268
    %v275 = vadd.f32 %v219, %v247
    %v276 = vadd.f32 %v220, %v256
    %v277 = vadd.f32 %v221, %v265
    %v278 = vadd.f32 %v222, %v274
    %v279 = vadd.f32 %v146, %v275
    %v280 = vadd.f32 %v147, %v276
    %v281 = vadd.f32 %v148, %v277
    %v282 = vadd.f32 %v149, %v278
    %283 = vst.msk [vmem:[#allocation2] sm:$0xff] %vm60, 0.0
    %284 = vst.msk [vmem:[#allocation2 + $0x18] sm:$0xff] %vm60, 0.0
    %285 = vst.msk [vmem:[#allocation2 + $0x8] sm:$0xff] %vm60, %v279
    %286 = vst.msk [vmem:[#allocation2 + $0x10] sm:$0xff] %vm60, %v280
    %287 = vst.msk [vmem:[#allocation2 + $0x20] sm:$0xff] %vm60, %v281
    %288 = vst.msk [vmem:[#allocation2 + $0x28] sm:$0xff] %vm60, %v282
    %v289 = vld [vmem:[#allocation2 + $0x4] sm:$0xff]
    %v290 = vld [vmem:[#allocation2 + $0xc] sm:$0xff]
    %v291 = vld [vmem:[#allocation2 + $0x1c] sm:$0xff]
    %v292 = vld [vmem:[#allocation2 + $0x24] sm:$0xff]
    %293 = vst.msk [vmem:[#allocation3] sm:$0xff] %vm60, %v289
    %294 = vst.msk [vmem:[#allocation3 + $0x8] sm:$0xff] %vm60, %v290
    %295 = vst.msk [vmem:[#allocation3 + $0x10] sm:$0xff] %vm60, %v291
    %296 = vst.msk [vmem:[#allocation3 + $0x18] sm:$0xff] %vm60, %v292
    %v297 = vld [vmem:[#allocation2 + $0x5] sm:$0xff]
    %v298 = vld [vmem:[#allocation2 + $0xd] sm:$0xff]
    %v299 = vld [vmem:[#allocation2 + $0x1d] sm:$0xff]
    %v300 = vld [vmem:[#allocation2 + $0x25] sm:$0xff]
    %305 = vrot.lane.b32.xlu0 %v297, 8
    %v306 = vpop.permute.xlu0 %305
    %307 = vrot.lane.b32.xlu0 %v298, 8
    %v308 = vpop.permute.xlu0 %307
    %309 = vrot.lane.b32.xlu0 %v299, 8
    %v310 = vpop.permute.xlu0 %309
    %311 = vrot.lane.b32.xlu0 %v300, 8
    %v312 = vpop.permute.xlu0 %311
    %vm317 = vcmask 130112
    %318 = vst.msk [vmem:[#allocation3] sm:$0xff] %vm317, %v306
    %319 = vst.msk [vmem:[#allocation3 + $0x8] sm:$0xff] %vm317, %v308
    %320 = vst.msk [vmem:[#allocation3 + $0x10] sm:$0xff] %vm317, %v310
    %321 = vst.msk [vmem:[#allocation3 + $0x18] sm:$0xff] %vm317, %v312
    %v322 = vld [vmem:[#allocation2 + $0x6] sm:$0xff]
    %v323 = vld [vmem:[#allocation2 + $0xe] sm:$0xff]
    %v324 = vld [vmem:[#allocation2 + $0x1e] sm:$0xff]
    %v325 = vld [vmem:[#allocation2 + $0x26] sm:$0xff]
    %330 = vrot.lane.b32.xlu0 %v322, 16
    %v331 = vpop.permute.xlu0 %330
    %332 = vrot.lane.b32.xlu0 %v323, 16
    %v333 = vpop.permute.xlu0 %332
    %334 = vrot.lane.b32.xlu0 %v324, 16
    %v335 = vpop.permute.xlu0 %334
    %336 = vrot.lane.b32.xlu0 %v325, 16
    %v337 = vpop.permute.xlu0 %336
    %vm342 = vcmask 195712
    %343 = vst.msk [vmem:[#allocation3] sm:$0xff] %vm342, %v331
    %344 = vst.msk [vmem:[#allocation3 + $0x8] sm:$0xff] %vm342, %v333
    %345 = vst.msk [vmem:[#allocation3 + $0x10] sm:$0xff] %vm342, %v335
    %346 = vst.msk [vmem:[#allocation3 + $0x18] sm:$0xff] %vm342, %v337
    %v347 = vld [vmem:[#allocation2 + $0x7] sm:$0xff]
    %v348 = vld [vmem:[#allocation2 + $0xf] sm:$0xff]
    %v349 = vld [vmem:[#allocation2 + $0x1f] sm:$0xff]
    %v350 = vld [vmem:[#allocation2 + $0x27] sm:$0xff]
    %355 = vrot.lane.b32.xlu0 %v347, 24
    %v356 = vpop.permute.xlu0 %355
    %357 = vrot.lane.b32.xlu0 %v348, 24
    %v358 = vpop.permute.xlu0 %357
    %359 = vrot.lane.b32.xlu0 %v349, 24
    %v360 = vpop.permute.xlu0 %359
    %361 = vrot.lane.b32.xlu0 %v350, 24
    %v362 = vpop.permute.xlu0 %361
    %vm367 = vcmask 261312
    %368 = vst.msk [vmem:[#allocation3] sm:$0xff] %vm367, %v356
    %369 = vst.msk [vmem:[#allocation3 + $0x8] sm:$0xff] %vm367, %v358
    %370 = vst.msk [vmem:[#allocation3 + $0x10] sm:$0xff] %vm367, %v360
    %371 = vst.msk [vmem:[#allocation3 + $0x18] sm:$0xff] %vm367, %v362
    %v372 = vld [vmem:[#allocation2 + $0x8] sm:$0xff]
    %v373 = vld [vmem:[#allocation2 + $0x10] sm:$0xff]
    %v374 = vld [vmem:[#allocation2 + $0x20] sm:$0xff]
    %v375 = vld [vmem:[#allocation2 + $0x28] sm:$0xff]
    %380 = vrot.lane.b32.xlu0 %v372, 32
    %v381 = vpop.permute.xlu0 %380
    %382 = vrot.lane.b32.xlu0 %v373, 32
    %v383 = vpop.permute.xlu0 %382
    %384 = vrot.lane.b32.xlu0 %v374, 32
    %v385 = vpop.permute.xlu0 %384
    %386 = vrot.lane.b32.xlu0 %v375, 32
    %v387 = vpop.permute.xlu0 %386
    %vm392 = vcmask 326912
    %393 = vst.msk [vmem:[#allocation3] sm:$0xff] %vm392, %v381
    %394 = vst.msk [vmem:[#allocation3 + $0x8] sm:$0xff] %vm392, %v383
    %395 = vst.msk [vmem:[#allocation3 + $0x10] sm:$0xff] %vm392, %v385
    %396 = vst.msk [vmem:[#allocation3 + $0x18] sm:$0xff] %vm392, %v387
    %v397 = vld [vmem:[#allocation3] sm:$0xff]
    %v398 = vld [vmem:[#allocation3 + $0x8] sm:$0xff]
    %v399 = vld [vmem:[#allocation3 + $0x10] sm:$0xff]
    %v400 = vld [vmem:[#allocation3 + $0x18] sm:$0xff]
    %v401 = vpack.c.bf16 %v398, %v397
    %v402 = vpack.c.bf16 %v400, %v399
    %v403 = vld [vmem:[%s5] sm:$0xf]
    %v404 = vld [vmem:[%s5 + $0x4] sm:$0xf]
    %v405 = vld [vmem:[%s5 + $0x8] sm:$0xf]
    %v406 = vld [vmem:[%s5 + $0xc] sm:$0xf]
    %v407 = vld [vmem:[%s5 + $0x10] sm:$0xf]
    %v408 = vlaneseq
    %v409 = vshrl.u32 %v408, 7
    %v410 = vsub.s32 0, %v409
    %v411 = vrot.slane %v40, %v410
    %v417 = vunpack.c.l.b16 %v403
    %v418 = vunpack.c.l.b16 %v404
    %v419 = vunpack.c.l.b16 %v405
    %v420 = vunpack.c.l.b16 %v406
    %v421 = vunpack.c.l.b16 %v407
    %v422 = vpack.c.b16 %v418, %v417
    %v423 = vpack.c.b16 %v420, %v419
    %v424 = vpack.c.b16 %v421, %v421
    %vm427 = vcmask 326656
    %v429 = vsel %vm427, %v401, 0
    %v432 = vsel %vm427, %v402, 0
    %v435 = vsel %vm73, %v424, 0
    %437 = vmatprep.subr.bf16.mxu0 0
    %438 = vmatpush1.bf16.msra.mxu0 0
    %439 = vmatprep.subr.bf16.mxu0 0
    %440 = vmatpush1.bf16.msra.mxu0 0
    %441 = vmatprep.subr.bf16.mxu0 0
    %442 = vmatpush1.bf16.msra.mxu0 0
    %443 = vmatprep.subr.bf16.mxu0 0
    %444 = vmatpush1.bf16.msra.mxu0 0
    %445 = vmatprep.subr.bf16.mxu0 0
    %446 = vmatpush1.bf16.msra.mxu0 0
    %447 = vmatprep.subr.bf16.mxu0 0
    %448 = vmatpush1.bf16.msra.mxu0 %v435
    %449 = vmatprep.subr.bf16.mxu0 0
    %450 = vmatpush1.bf16.msra.mxu0 %v423
    %451 = vmatprep.subr.bf16.mxu0 0
    %452 = vmatpush1.bf16.msra.mxu0 %v422
    %453 = vmatprep.subr.bf16.mxu0 0
    %454 = vmatpush2.bf16.msra.mxu0 0
    %455 = vmatprep.subr.bf16.mxu0 0
    %456 = vmatpush2.bf16.msra.mxu0 0
    %457 = vmatprep.subr.bf16.mxu0 0
    %458 = vmatpush2.bf16.msra.mxu0 0
    %459 = vmatprep.subr.bf16.mxu0 0
    %460 = vmatpush2.bf16.msra.mxu0 0
    %461 = vmatprep.subr.bf16.mxu0 0
    %462 = vmatpush2.bf16.msra.mxu0 0
    %463 = vmatprep.subr.bf16.mxu0 0
    %464 = vmatpush2.bf16.msra.mxu0 0
    %465 = vmatprep.subr.bf16.mxu0 0
    %466 = vmatpush2.bf16.msra.mxu0 0
    %467 = vmatprep.subr.bf16.mxu0 0
    %468 = vmatpush2.bf16.msra.mxu0 0
    %469 = vmatprep.mubr.bf16.mxu0 0
    %470 = vmatmul.mubr.bf16.gmra.mxu0 %v429
    %v471 = vpop.f32.mrf.mxu0
    %v472 = vadd.f32 %v411, %v471
    %v473 = vpop.f32.mrf.mxu0
    %v474 = vpop.f32.mrf.mxu0
    %v475 = vadd.f32 %v411, %v474
    %v476 = vpop.f32.mrf.mxu0
    %477 = vmatprep.mubr.bf16.mxu0 0
    %478 = vmatmul.mubr.bf16.gmra.mxu0 %v432
    %v479 = vpop.f32.mrf.mxu0
    %v480 = vadd.f32 %v411, %v479
    %v481 = vpop.f32.mrf.mxu0
    %v482 = vpop.f32.mrf.mxu0
    %v483 = vadd.f32 %v411, %v482
    %v484 = vpop.f32.mrf.mxu0
    %485 = vdwg.mxu0
    %v486 = vmax.f32 %v472, 0.0
    %v487 = vmax.f32 %v475, 0.0
    %v488 = vmax.f32 %v480, 0.0
    %v489 = vmax.f32 %v483, 0.0
    %v490 = vand.u32 2147483647, %v472
    %v491 = vand.u32 2147483647, %v475
    %v492 = vand.u32 2147483647, %v480
    %v493 = vand.u32 2147483647, %v483
    %v494 = vsub.f32 0.0, %v490
    %v495 = vsub.f32 0.0, %v491
    %v496 = vsub.f32 0.0, %v492
    %v497 = vsub.f32 0.0, %v493
    %v498 = vmul.f32 %v494, 1.442695
    %v499 = vpow.pop %v498
    %v500 = vmul.f32 %v495, 1.442695
    %v501 = vpow.pop %v500
    %v502 = vmul.f32 %v496, 1.442695
    %v503 = vpow.pop %v502
    %v504 = vmul.f32 %v497, 1.442695
    %v505 = vpow.pop %v504
    %v506 = vadd.f32 %v499, 1.0
    %v507 = vlog2.pop %v506
    %v508 = vmul.f32 %v507, 0.6931472
    %v509 = vmul.f32 -0.5, %v499
    %v510 = vadd.f32 %v509, 1.0
    %v511 = vmul.f32 %v510, %v499
    %v512 = vand.u32 2147483647, %v499
    %vm513 = vcmp.lt.f32.partialorder %v512, 0.0004427343
    %v514 = vsel %vm513, %v511, %v508
    %v515 = vadd.f32 %v501, 1.0
    %v516 = vlog2.pop %v515
    %v517 = vmul.f32 %v516, 0.6931472
    %v518 = vmul.f32 -0.5, %v501
    %v519 = vadd.f32 %v518, 1.0
    %v520 = vmul.f32 %v519, %v501
    %v521 = vand.u32 2147483647, %v501
    %vm522 = vcmp.lt.f32.partialorder %v521, 0.0004427343
    %v523 = vsel %vm522, %v520, %v517
    %v524 = vadd.f32 %v503, 1.0
    %v525 = vlog2.pop %v524
    %v526 = vmul.f32 %v525, 0.6931472
    %v527 = vmul.f32 -0.5, %v503
    %v528 = vadd.f32 %v527, 1.0
    %v529 = vmul.f32 %v528, %v503
    %v530 = vand.u32 2147483647, %v503
    %vm531 = vcmp.lt.f32.partialorder %v530, 0.0004427343
    %v532 = vsel %vm531, %v529, %v526
    %v533 = vadd.f32 %v505, 1.0
    %v534 = vlog2.pop %v533
    %v535 = vmul.f32 %v534, 0.6931472
    %v536 = vmul.f32 -0.5, %v505
    %v537 = vadd.f32 %v536, 1.0
    %v538 = vmul.f32 %v537, %v505
    %v539 = vand.u32 2147483647, %v505
    %vm540 = vcmp.lt.f32.partialorder %v539, 0.0004427343
    %v541 = vsel %vm540, %v538, %v535
    %v542 = vadd.f32 %v486, %v514
    %v543 = vadd.f32 %v487, %v523
    %v544 = vadd.f32 %v488, %v532
    %v545 = vadd.f32 %v489, %v541
    %v546 = vpack.c.bf16 %v543, %v542
    %v547 = vpack.c.bf16 %v545, %v544
    %v548 = vld [vmem:[%s6] sm:$0xf]
    %v549 = vld [vmem:[%s6 + $0x4] sm:$0xf]
    %v550 = vlaneseq
    %v551 = vshrl.u32 %v550, 7
    %v552 = vsub.s32 0, %v551
    %v553 = vrot.slane %v41, %v552
    %v556 = vunpack.c.l.b16 %v548
    %v557 = vunpack.c.l.b16 %v549
    %v558 = vpack.c.b16 %v557, %v556
    %vm560 = vcmask 130048
    %v562 = vsel %vm560, %v546, 0
    %v565 = vsel %vm560, %v547, 0
    %567 = vmatprep.subr.bf16.mxu0 0
    %568 = vmatpush1.bf16.msra.mxu0 0
    %569 = vmatprep.subr.bf16.mxu0 0
    %570 = vmatpush1.bf16.msra.mxu0 0
    %571 = vmatprep.subr.bf16.mxu0 0
    %572 = vmatpush1.bf16.msra.mxu0 0
    %573 = vmatprep.subr.bf16.mxu0 0
    %574 = vmatpush1.bf16.msra.mxu0 0
    %575 = vmatprep.subr.bf16.mxu0 0
    %576 = vmatpush1.bf16.msra.mxu0 0
    %577 = vmatprep.subr.bf16.mxu0 0
    %578 = vmatpush1.bf16.msra.mxu0 0
    %579 = vmatprep.subr.bf16.mxu0 0
    %580 = vmatpush1.bf16.msra.mxu0 0
    %581 = vmatprep.subr.bf16.mxu0 0
    %582 = vmatpush1.bf16.msra.mxu0 %v558
    %583 = vmatprep.subr.bf16.mxu0 0
    %584 = vmatpush2.bf16.msra.mxu0 0
    %585 = vmatprep.subr.bf16.mxu0 0
    %586 = vmatpush2.bf16.msra.mxu0 0
    %587 = vmatprep.subr.bf16.mxu0 0
    %588 = vmatpush2.bf16.msra.mxu0 0
    %589 = vmatprep.subr.bf16.mxu0 0
    %590 = vmatpush2.bf16.msra.mxu0 0
    %591 = vmatprep.subr.bf16.mxu0 0
    %592 = vmatpush2.bf16.msra.mxu0 0
    %593 = vmatprep.subr.bf16.mxu0 0
    %594 = vmatpush2.bf16.msra.mxu0 0
    %595 = vmatprep.subr.bf16.mxu0 0
    %596 = vmatpush2.bf16.msra.mxu0 0
    %597 = vmatprep.subr.bf16.mxu0 0
    %598 = vmatpush2.bf16.msra.mxu0 0
    %599 = vmatprep.mubr.bf16.mxu0 0
    %600 = vmatmul.mubr.bf16.gmra.mxu0 %v562
    %v601 = vpop.f32.mrf.mxu0
    %v602 = vadd.f32 %v553, %v601
    %v603 = vpop.f32.mrf.mxu0
    %v604 = vpop.f32.mrf.mxu0
    %v605 = vadd.f32 %v553, %v604
    %v606 = vpop.f32.mrf.mxu0
    %607 = vmatprep.mubr.bf16.mxu0 0
    %608 = vmatmul.mubr.bf16.gmra.mxu0 %v565
    %v609 = vpop.f32.mrf.mxu0
    %v610 = vadd.f32 %v553, %v609
    %v611 = vpop.f32.mrf.mxu0
    %v612 = vpop.f32.mrf.mxu0
    %v613 = vadd.f32 %v553, %v612
    %v614 = vpop.f32.mrf.mxu0
    %615 = vdwg.mxu0
    %v616 = vmax.f32 %v602, 0.0
    %v617 = vmax.f32 %v605, 0.0
    %v618 = vmax.f32 %v610, 0.0
    %v619 = vmax.f32 %v613, 0.0
    %v620 = vand.u32 2147483647, %v602
    %v621 = vand.u32 2147483647, %v605
    %v622 = vand.u32 2147483647, %v610
    %v623 = vand.u32 2147483647, %v613
    %v624 = vsub.f32 0.0, %v620
    %v625 = vsub.f32 0.0, %v621
    %v626 = vsub.f32 0.0, %v622
    %v627 = vsub.f32 0.0, %v623
    %v628 = vmul.f32 %v624, 1.442695
    %v629 = vpow.pop %v628
    %v630 = vmul.f32 %v625, 1.442695
    %v631 = vpow.pop %v630
    %v632 = vmul.f32 %v626, 1.442695
    %v633 = vpow.pop %v632
    %v634 = vmul.f32 %v627, 1.442695
    %v635 = vpow.pop %v634
    %v636 = vadd.f32 %v629, 1.0
    %v637 = vlog2.pop %v636
    %v638 = vmul.f32 %v637, 0.6931472
    %v639 = vmul.f32 -0.5, %v629
    %v640 = vadd.f32 %v639, 1.0
    %v641 = vmul.f32 %v640, %v629
    %v642 = vand.u32 2147483647, %v629
    %vm643 = vcmp.lt.f32.partialorder %v642, 0.0004427343
    %v644 = vsel %vm643, %v641, %v638
    %v645 = vadd.f32 %v631, 1.0
    %v646 = vlog2.pop %v645
    %v647 = vmul.f32 %v646, 0.6931472
    %v648 = vmul.f32 -0.5, %v631
    %v649 = vadd.f32 %v648, 1.0
    %v650 = vmul.f32 %v649, %v631
    %v651 = vand.u32 2147483647, %v631
    %vm652 = vcmp.lt.f32.partialorder %v651, 0.0004427343
    %v653 = vsel %vm652, %v650, %v647
    %v654 = vadd.f32 %v633, 1.0
    %v655 = vlog2.pop %v654
    %v656 = vmul.f32 %v655, 0.6931472
    %v657 = vmul.f32 -0.5, %v633
    %v658 = vadd.f32 %v657, 1.0
    %v659 = vmul.f32 %v658, %v633
    %v660 = vand.u32 2147483647, %v633
    %vm661 = vcmp.lt.f32.partialorder %v660, 0.0004427343
    %v662 = vsel %vm661, %v659, %v656
    %v663 = vadd.f32 %v635, 1.0
    %v664 = vlog2.pop %v663
    %v665 = vmul.f32 %v664, 0.6931472
    %v666 = vmul.f32 -0.5, %v635
    %v667 = vadd.f32 %v666, 1.0
    %v668 = vmul.f32 %v667, %v635
    %v669 = vand.u32 2147483647, %v635
    %vm670 = vcmp.lt.f32.partialorder %v669, 0.0004427343
    %v671 = vsel %vm670, %v668, %v665
    %v672 = vadd.f32 %v616, %v644
    %v673 = vadd.f32 %v617, %v653
    %v674 = vadd.f32 %v618, %v662
    %v675 = vadd.f32 %v619, %v671
    %v676 = vadd.f32 %v34, %v672
    %v677 = vadd.f32 %v35, %v673
    %v678 = vadd.f32 %v36, %v674
    %v679 = vadd.f32 %v37, %v675
    %v680 = vpack.c.bf16 %v677, %v676
    %v681 = vpack.c.bf16 %v679, %v678
    %v682 = vld [vmem:[%s7] sm:$0xf]
    %v683 = vlaneseq
    %v684 = vshrl.u32 %v683, 7
    %v685 = vsub.s32 0, %v684
    %v686 = vrot.slane %v42, %v685
    %v688 = vsel %vm60, %v680, 0
    %v691 = vsel %vm60, %v681, 0
    %v694 = vsel %vm73, %v682, 0
    %696 = vmatprep.subr.bf16.mxu0 0
    %697 = vmatpush1.bf16.msra.mxu0 0
    %698 = vmatprep.subr.bf16.mxu0 0
    %699 = vmatpush1.bf16.msra.mxu0 0
    %700 = vmatprep.subr.bf16.mxu0 0
    %701 = vmatpush1.bf16.msra.mxu0 0
    %702 = vmatprep.subr.bf16.mxu0 0
    %703 = vmatpush1.bf16.msra.mxu0 0
    %704 = vmatprep.subr.bf16.mxu0 0
    %705 = vmatpush1.bf16.msra.mxu0 0
    %706 = vmatprep.subr.bf16.mxu0 0
    %707 = vmatpush1.bf16.msra.mxu0 0
    %708 = vmatprep.subr.bf16.mxu0 0
    %709 = vmatpush1.bf16.msra.mxu0 0
    %710 = vmatprep.subr.bf16.mxu0 0
    %711 = vmatpush1.bf16.msra.mxu0 %v694
    %712 = vmatprep.subr.bf16.mxu0 0
    %713 = vmatpush2.bf16.msra.mxu0 0
    %714 = vmatprep.subr.bf16.mxu0 0
    %715 = vmatpush2.bf16.msra.mxu0 0
    %716 = vmatprep.subr.bf16.mxu0 0
    %717 = vmatpush2.bf16.msra.mxu0 0
    %718 = vmatprep.subr.bf16.mxu0 0
    %719 = vmatpush2.bf16.msra.mxu0 0
    %720 = vmatprep.subr.bf16.mxu0 0
    %721 = vmatpush2.bf16.msra.mxu0 0
    %722 = vmatprep.subr.bf16.mxu0 0
    %723 = vmatpush2.bf16.msra.mxu0 0
    %724 = vmatprep.subr.bf16.mxu0 0
    %725 = vmatpush2.bf16.msra.mxu0 0
    %726 = vmatprep.subr.bf16.mxu0 0
    %727 = vmatpush2.bf16.msra.mxu0 0
    %728 = vmatprep.mubr.bf16.mxu0 0
    %729 = vmatmul.mubr.bf16.gmra.mxu0 %v688
    %v730 = vpop.f32.mrf.mxu0
    %v731 = vadd.f32 %v686, %v730
    %v732 = vpop.f32.mrf.mxu0
    %v733 = vpop.f32.mrf.mxu0
    %v734 = vadd.f32 %v686, %v733
    %v735 = vpop.f32.mrf.mxu0
    %736 = vmatprep.mubr.bf16.mxu0 0
    %737 = vmatmul.mubr.bf16.gmra.mxu0 %v691
    %v738 = vpop.f32.mrf.mxu0
    %v739 = vadd.f32 %v686, %v738
    %v740 = vpop.f32.mrf.mxu0
    %v741 = vpop.f32.mrf.mxu0
    %v742 = vadd.f32 %v686, %v741
    %v743 = vpop.f32.mrf.mxu0
    %744 = vdwg.mxu0
    %745 = vst [vmem:[#allocation4] sm:$0xff] %v731
    %746 = vst [vmem:[#allocation4 + $0x8] sm:$0xff] %v734
    %747 = vst [vmem:[#allocation4 + $0x10] sm:$0xff] %v739
    %748 = vst [vmem:[#allocation4 + $0x18] sm:$0xff] %v742
    // Predicated region
    $region38: #{tpu_custom_call.1} parent=1 // pred_check
      _
    $region39: #{tpu_custom_call.1} parent=1 // pred_check_branch
      %750 = sbr.rel (0) target = $region41
    $region40: #{tpu_custom_call.1} parent=1 // pred_region
      %s752 = ssub.s32 512, 512
      %753 = vsyncadd [#allocation5], %s752
      %s754 = sshll.u32 [#allocation4], 4
      %s755 = int_to_ptr.vmem [resolvable:$true] %s754
      %760 = dma.vmem_to_hbm [thread:$0]  %s755, 512, %s9, [#allocation5], 128, 128, 8
    $region41: #{tpu_custom_call.1} parent=1 // pred_fallthru
      _
    // Predicated region
    $region42: #{tpu_custom_call.1} parent=1 // pred_check
      _
    $region43: #{tpu_custom_call.1} parent=1 // pred_check_branch
      %762 = sbr.rel (0) target = $region45
    $region44: #{tpu_custom_call.1} parent=1 // pred_region
      %763 = dma.done [#allocation5], 512
    $region45: #{tpu_custom_call.1} parent=1 // pred_fallthru
      _
    %764 = vsyncpa [#allocation5], 1

</llo_original>
